<compile_context>
chip_gen: v7x
topology: tpu7x:2x2x1
jax: 0.10.0
libtpu: 0.0.40
codegen_flags: <defaults>
</compile_context>

<pallas_src>
import functools

import jax
import jax.numpy as jnp
from jax import lax
from jax.experimental import pallas as pl
from jax.experimental.pallas import tpu as pltpu


# ---------------------------------------------------------------------------
# One-time probe: pltpu.roll sign convention (jnp.roll-like: out[i] = x[i-shift])
# Computed eagerly (outside any trace) and baked into the kernels as a bool.
# ---------------------------------------------------------------------------
@functools.lru_cache(maxsize=None)
def _roll_like_jnp() -> bool:
    def probe(x_ref, o_ref):
        o_ref[...] = pltpu.roll(x_ref[...], 1, axis=1)

    x = jnp.broadcast_to(jnp.arange(128, dtype=jnp.float32), (8, 128))
    out = pl.pallas_call(
        probe,
        out_shape=jax.ShapeDtypeStruct((8, 128), jnp.float32),
        grid=(1,),
        in_specs=[pl.BlockSpec((8, 128), lambda i: (0, 0))],
        out_specs=pl.BlockSpec((8, 128), lambda i: (0, 0)),
    )(x)
    return bool(out[0, 0] == 127.0)


# ---------------------------------------------------------------------------
# In-kernel helpers: flat lane shift + masked im2col 3x3 conv (single matmul)
# ---------------------------------------------------------------------------
def _shift_flat(x, s, n, roll_like_jnp):
    """out[:, f] = x[:, (f + s) mod n]; wrapped entries are masked by caller."""
    if s % n == 0:
        return x
    shift = (-s) % n if roll_like_jnp else s % n
    return pltpu.roll(x, shift, axis=1)


def _conv3x3_im2col(x, wmat, P, Q, roll_like_jnp):
    """3x3 'same' conv (zero padding) on a flattened channels-first image.

    x:    (C, P*Q)   bf16, spatial flattened row-major (f = p*Q + q)
    wmat: (Cout, 9*C) bf16, column order (dh*3 + dw)*C + c
    returns (Cout, P*Q) float32.
    """
    _, N = x.shape
    pos = lax.broadcasted_iota(jnp.int32, (1, N), 1)
    pp = pos // Q
    qq = pos % Q
    taps = []
    for dh in range(3):
        for dw in range(3):
            s = (dh - 1) * Q + (dw - 1)          # flat offset of this tap
            shifted = _shift_flat(x, s, N, roll_like_jnp)
            valid = ((pp + (dh - 1) >= 0) & (pp + (dh - 1) < P)
                     & (qq + (dw - 1) >= 0) & (qq + (dw - 1) < Q))
            taps.append(jnp.where(valid, shifted, jnp.zeros_like(shifted)))
    patches = jnp.concatenate(taps, axis=0)                      # (9*C, N)
    return jnp.dot(wmat, patches, preferred_element_type=jnp.float32)


# ---------------------------------------------------------------------------
# Kernel 1: ConvTranspose2d(k=2, s=2) as a single lane-dense matmul per image
#   out[(dh,dw,co), h*W+w] = sum_ci w_up[ci,co,dh,dw] * x[ci,h,w] + b_up[co]
# ---------------------------------------------------------------------------
def _deconv_kernel(x_ref, w_ref, b_ref, o_ref):
    y = jnp.dot(w_ref[...], x_ref[0], preferred_element_type=jnp.float32)
    o_ref[0] = (y + b_ref[...]).astype(o_ref.dtype)


# ---------------------------------------------------------------------------
# Kernel 2 (fused): concat([up, skip]) -> conv1+bias -> ReLU -> + relu(W_t t+b_t)
#                   -> conv2+bias -> ReLU,  all per batch element, lane-dense.
# ---------------------------------------------------------------------------
def _upblock_main_kernel(up_ref, skip_ref, tT_ref, w1_ref, b1_ref, w2_ref,
                         b2_ref, wt_ref, bt_ref, o_ref, *, P, Q, roll_like_jnp):
    # channel concat (upsampled first, then skip) done in VMEM, no HBM round trip
    xc = jnp.concatenate([up_ref[0], skip_ref[0]], axis=0)          # (Cin_tot, N) bf16

    h = _conv3x3_im2col(xc, w1_ref[...], P, Q, roll_like_jnp) + b1_ref[...]
    h = jnp.maximum(h, 0.0)                                         # (Cout, N) f32

    # fused time-embedding projection: relu(wt @ t + bt), select this batch's column
    tall = jnp.dot(wt_ref[...], tT_ref[...],
                   preferred_element_type=jnp.float32) + bt_ref[...]  # (Cout, B)
    tall = jnp.maximum(tall, 0.0)
    lane = lax.broadcasted_iota(jnp.int32, tall.shape, 1)
    t_col = jnp.sum(jnp.where(lane == pl.program_id(0), tall, 0.0),
                    axis=1, keepdims=True)                           # (Cout, 1)
    h = h + t_col

    h2 = _conv3x3_im2col(h.astype(jnp.bfloat16), w2_ref[...], P, Q,
                         roll_like_jnp) + b2_ref[...]
    o_ref[0] = jnp.maximum(h2, 0.0).astype(o_ref.dtype)


# ---------------------------------------------------------------------------
# UpBlock forward (PyTorch semantics, NCHW in / NCHW out)
# ---------------------------------------------------------------------------
def upblock_forward(params, x, skip, t_emb):
    B, Cin, H, W = x.shape
    Cout = params["w_up"].shape[1]
    Cskip = skip.shape[1]
    Cin_tot = Cout + Cskip
    P, Q = 2 * H, 2 * W
    N = P * Q
    bf = jnp.bfloat16
    roll_like = _roll_like_jnp()          # eager probe, baked in as a python bool

    # --- ConvTranspose2d(k=2, s=2): lane-dense matmul per image ---
    wup_m = jnp.transpose(params["w_up"], (2, 3, 1, 0)).reshape(4 * Cout, Cin).astype(bf)
    bup_c = jnp.tile(params["b_up"], 4).reshape(4 * Cout, 1).astype(jnp.float32)
    x_cm = x.reshape(B, Cin, H * W).astype(bf)

    m = pl.pallas_call(
        _deconv_kernel,
        out_shape=jax.ShapeDtypeStruct((B, 4 * Cout, H * W), bf),
        grid=(B,),
        in_specs=[
            pl.BlockSpec((1, Cin, H * W), lambda b: (b, 0, 0)),
            pl.BlockSpec((4 * Cout, Cin), lambda b: (0, 0)),
            pl.BlockSpec((4 * Cout, 1), lambda b: (0, 0)),
        ],
        out_specs=pl.BlockSpec((1, 4 * Cout, H * W), lambda b: (b, 0, 0)),
        compiler_params=pltpu.CompilerParams(dimension_semantics=("parallel",)),
    )(x_cm, wup_m, bup_c)

    # depth-to-space (k == stride, no overlap): one XLA transpose of a bf16 tensor
    # TODO(synk): fold this stride-2 scatter + the deconv matmul into the fused
    #             conv kernel (needs an in-kernel interleave/gather).
    up = m.reshape(B, 2, 2, Cout, H, W)
    up = jnp.transpose(up, (0, 3, 4, 1, 5, 2)).reshape(B, Cout, N)   # (B, Cout, 2H*2W) bf16

    skip_f = skip.reshape(B, Cskip, N).astype(bf)

    # --- weights in im2col-matched (Cout, 9*C) layout, bf16 for the MXU ---
    w1m = jnp.transpose(params["w1"], (3, 0, 1, 2)).reshape(Cout, 9 * Cin_tot).astype(bf)
    w2m = jnp.transpose(params["w2"], (3, 0, 1, 2)).reshape(Cout, 9 * Cout).astype(bf)
    b1c = params["b1"].reshape(Cout, 1).astype(jnp.float32)
    b2c = params["b2"].reshape(Cout, 1).astype(jnp.float32)
    wtm = jnp.transpose(params["wt"]).astype(bf)                     # (Cout, Tdim)
    btc = params["bt"].reshape(Cout, 1).astype(jnp.float32)
    tT = jnp.transpose(t_emb).astype(bf)                             # (Tdim, B)
    Tdim = tT.shape[0]

    kernel = functools.partial(_upblock_main_kernel, P=P, Q=Q,
                               roll_like_jnp=roll_like)
    # TODO(synk): for production spatial sizes on v7x, add a row-tile grid axis
    #             with a 1-row halo instead of whole-image blocks.
    out = pl.pallas_call(
        kernel,
        out_shape=jax.ShapeDtypeStruct((B, Cout, N), jnp.float32),
        grid=(B,),
        in_specs=[
            pl.BlockSpec((1, Cout, N), lambda b: (b, 0, 0)),          # up
            pl.BlockSpec((1, Cskip, N), lambda b: (b, 0, 0)),         # skip
            pl.BlockSpec((Tdim, B), lambda b: (0, 0)),                # t_emb^T
            pl.BlockSpec((Cout, 9 * Cin_tot), lambda b: (0, 0)),      # w1
            pl.BlockSpec((Cout, 1), lambda b: (0, 0)),                # b1
            pl.BlockSpec((Cout, 9 * Cout), lambda b: (0, 0)),         # w2
            pl.BlockSpec((Cout, 1), lambda b: (0, 0)),                # b2
            pl.BlockSpec((Cout, Tdim), lambda b: (0, 0)),             # wt
            pl.BlockSpec((Cout, 1), lambda b: (0, 0)),                # bt
        ],
        out_specs=pl.BlockSpec((1, Cout, N), lambda b: (b, 0, 0)),
        compiler_params=pltpu.CompilerParams(
            dimension_semantics=("parallel",),
            vmem_limit_bytes=32 * 1024 * 1024,
        ),
    )(up, skip_f, tT, w1m, b1c, w2m, b2c, wtm, btc)

    return out.reshape(B, Cout, P, Q)                                 # NCHW


# ---------------------------------------------------------------------------
# Pure-JAX f32 reference (for numeric sanity check)
# ---------------------------------------------------------------------------
def upblock_reference(params, x, skip, t_emb):
    B, Cin, H, W = x.shape
    Cout = params["w_up"].shape[1]
    up = jnp.einsum("bchw,cokl->bohkwl", x, params["w_up"]).reshape(
        B, Cout, 2 * H, 2 * W
    )
    up = up + params["b_up"][None, :, None, None]
    xc = jnp.concatenate([up, skip], axis=1)

    xc = jnp.transpose(xc, (0, 2, 3, 1))
    h = jax.lax.conv_general_dilated(
        xc, params["w1"], (1, 1), [(1, 1), (1, 1)],
        dimension_numbers=("NHWC", "HWIO", "NHWC")) + params["b1"]
    h = jnp.maximum(h, 0.0)
    t = jnp.maximum(t_emb @ params["wt"] + params["bt"], 0.0)
    h = h + t[:, None, None, :]
    h = jax.lax.conv_general_dilated(
        h, params["w2"], (1, 1), [(1, 1), (1, 1)],
        dimension_numbers=("NHWC", "HWIO", "NHWC")) + params["b2"]
    h = jnp.maximum(h, 0.0)
    return jnp.transpose(h, (0, 3, 1, 2))


if __name__ == "__main__":
    in_channels, out_channels, time_emb_dim = 8, 4, 32
    B, H, W = 2, 8, 8                      # x spatial; skip is 2H x 2W
    skip_channels = in_channels - out_channels

    key = jax.random.PRNGKey(0)
    ks = jax.random.split(key, 10)
    params = {
        "w_up": jax.random.normal(ks[0], (in_channels, out_channels, 2, 2), jnp.float32) * 0.1,
        "b_up": jax.random.normal(ks[1], (out_channels,), jnp.float32) * 0.1,
        "w1":   jax.random.normal(ks[2], (3, 3, in_channels, out_channels), jnp.float32) * 0.1,
        "b1":   jax.random.normal(ks[3], (out_channels,), jnp.float32) * 0.1,
        "w2":   jax.random.normal(ks[4], (3, 3, out_channels, out_channels), jnp.float32) * 0.1,
        "b2":   jax.random.normal(ks[5], (out_channels,), jnp.float32) * 0.1,
        "wt":   jax.random.normal(ks[6], (time_emb_dim, out_channels), jnp.float32) * 0.1,
        "bt":   jax.random.normal(ks[7], (out_channels,), jnp.float32) * 0.1,
    }

    x = jax.random.normal(ks[8], (B, in_channels, H, W), jnp.float32)
    skip = jax.random.normal(ks[9], (B, skip_channels, 2 * H, 2 * W), jnp.float32)
    t_emb = jax.random.normal(jax.random.PRNGKey(1), (B, time_emb_dim), jnp.float32)

    out = jax.block_until_ready(upblock_forward(params, x, skip, t_emb))
    ref = jax.block_until_ready(upblock_reference(params, x, skip, t_emb))

    assert out.shape == (B, out_channels, 2 * H, 2 * W)
    # bf16 MXU inputs (f32 accumulation) -> loosened tolerance vs f32 reference
    assert jnp.allclose(out, ref, atol=5e-2, rtol=5e-2), float(jnp.max(jnp.abs(out - ref)))
    print("KERNEL_OK")
</pallas_src>

<mosaic_0001>
module attributes {stable_mosaic.version = 11 : i64} {
  func.func @probe(%arg0: i32, %arg1: memref<8x128xf32, #tpu.memory_space<vmem>>, %arg2: memref<8x128xf32, #tpu.memory_space<vmem>>) attributes {dimension_semantics = [#tpu.dimension_semantics<arbitrary>], iteration_bounds = array<i64: 1>, scalar_prefetch = 0 : i64, scratch_operands = 0 : i64, tpu.core_type = #tpu.core_type<tc>, window_params = [{pipeline_mode = #tpu.pipeline_mode<synchronous>, transform_indices = @transform_0, window_bounds = array<i64: 8, 128>}, {pipeline_mode = #tpu.pipeline_mode<synchronous>, transform_indices = @transform_1, window_bounds = array<i64: 8, 128>}]} {
    %c0 = arith.constant 0 : index
    %c0_0 = arith.constant 0 : index
    %0 = vector.load %arg1[%c0, %c0_0] : memref<8x128xf32, #tpu.memory_space<vmem>>, vector<8x128xf32>
    %c1_i32 = arith.constant 1 : i32
    %1 = tpu.dynamic_rotate %0 by %c1_i32 dim 1 : vector<8x128xf32>, i32 -> vector<8x128xf32>
    %c0_1 = arith.constant 0 : index
    %c0_2 = arith.constant 0 : index
    %2 = vector.load %arg2[%c0_1, %c0_2] : memref<8x128xf32, #tpu.memory_space<vmem>>, vector<8x128xf32>
    tpu.vector_store %arg2[%c0_1, %c0_2], %1 {strides = array<i32>} : memref<8x128xf32, #tpu.memory_space<vmem>>, vector<8x128xf32>,
    return
  }
  func.func @transform_0(%arg0: i32) -> (i32, i32) {
    %c0_i32 = arith.constant 0 : i32
    %c0_i32_0 = arith.constant 0 : i32
    %c0_i32_1 = arith.constant 0 : i32
    return %c0_i32, %c0_i32_0 : i32, i32
  }
  func.func @transform_1(%arg0: i32) -> (i32, i32) {
    %c0_i32 = arith.constant 0 : i32
    %c0_i32_0 = arith.constant 0 : i32
    %c0_i32_1 = arith.constant 0 : i32
    return %c0_i32, %c0_i32_0 : i32, i32
  }
}

</mosaic_0001>

<llo_original>
// kernel: tpu_custom_call.1
$region0: #{tpu_custom_call.1}
  #allocation0 [shape = 'u32[]', space=smem, size = 0x4, offset = 0x4, fixed_abs, tag = 'smem constant byte address 0x4 - core index']
  #allocation1 [shape = 'u32[144,128]{1,0:T(1,128)}', space=vmem, size = 0x12000, scoped, tag = 'internal scratch']
  %s0 = inlined_call_operand.hbm [shape: f32[8,128], index: 0, kind: input, shape index: {}]
  %s1 = inlined_call_operand.hbm [shape: f32[8,128], index: 1, kind: output, shape index: {}]
  %s2 = sld [smem:[#allocation0]]
  $region18: #{tpu_custom_call.1} parent=0
    _
  %s4 = ssub.s32 1, %s2
  %s5 = scalar_select 0, %s4, %s2
  $region1: #{tpu_custom_call.1} parent=0
    #allocation2 [shape = 'u8[4096]{0}', space=vmem, size = 0x1000, scoped, tag = 'input window, operand 0, single buffered']
    #allocation3 [shape = 's32[1]{0}', space=sflag, size = 0x4, scoped, tag = 'scoped memory for tpu_custom_call.1']
    #allocation4 [shape = 's32[1]{0}', space=sflag, size = 0x4, scoped, tag = 'scoped memory for tpu_custom_call.1']
    #allocation5 [shape = 'u8[4096]{0}', space=vmem, size = 0x1000, scoped, tag = 'output window, operand 0, single buffered']
    %6 = vsyncpa [#allocation3], 0
    %7 = vsyncpa [#allocation4], 0
    // Predicated region
    $region2: #{tpu_custom_call.1} parent=1 // pred_check
      _
    $region3: #{tpu_custom_call.1} parent=1 // pred_check_branch
      %9 = sbr.rel (0) target = $region5
    $region4: #{tpu_custom_call.1} parent=1 // pred_region
      %s11 = ssub.s32 128, 128
      %12 = vsyncadd [#allocation3], %s11
      %s14 = sshll.u32 [#allocation2], 4
      %s15 = int_to_ptr.vmem [resolvable:$true] %s14
      %17 = dma.hbm_to_vmem [thread:$0]  %s0, 128, %s15, [#allocation3]
    $region5: #{tpu_custom_call.1} parent=1 // pred_fallthru
      _
    // Predicated region
    $region6: #{tpu_custom_call.1} parent=1 // pred_check
      _
    $region7: #{tpu_custom_call.1} parent=1 // pred_check_branch
      %19 = sbr.rel (0) target = $region9
    $region8: #{tpu_custom_call.1} parent=1 // pred_region
      %20 = dma.done [#allocation3], 128
    $region9: #{tpu_custom_call.1} parent=1 // pred_fallthru
      _
    %v21 = vld [vmem:[#allocation2] sm:$0xff]
    %22 = vrot.lane.b32.xlu0 %v21, 1
    %v23 = vpop.permute.xlu0 %22
    %24 = vst [vmem:[#allocation5] sm:$0xff] %v23
    // Predicated region
    $region10: #{tpu_custom_call.1} parent=1 // pred_check
      _
    $region11: #{tpu_custom_call.1} parent=1 // pred_check_branch
      %26 = sbr.rel (0) target = $region13
    $region12: #{tpu_custom_call.1} parent=1 // pred_region
      %s28 = ssub.s32 128, 128
      %29 = vsyncadd [#allocation4], %s28
      %s31 = sshll.u32 [#allocation5], 4
      %s32 = int_to_ptr.vmem [resolvable:$true] %s31
      %34 = dma.vmem_to_hbm [thread:$0]  %s32, 128, %s1, [#allocation4]
    $region13: #{tpu_custom_call.1} parent=1 // pred_fallthru
      _
    // Predicated region
    $region14: #{tpu_custom_call.1} parent=1 // pred_check
      _
    $region15: #{tpu_custom_call.1} parent=1 // pred_check_branch
      %36 = sbr.rel (0) target = $region17
    $region16: #{tpu_custom_call.1} parent=1 // pred_region
      %37 = dma.done [#allocation4], 128
    $region17: #{tpu_custom_call.1} parent=1 // pred_fallthru
      _
    %38 = vsyncpa [#allocation3], 1
    %39 = vsyncpa [#allocation4], 1

</llo_original>
